<compile_context>
chip_gen: v7x
topology: tpu7x:2x2x1
jax: 0.10.0
libtpu: 0.0.40
codegen_flags: <defaults>
</compile_context>

<pallas_src>
import functools

import jax
import jax.numpy as jnp
from jax import lax
from jax.experimental import pallas as pl
from jax.experimental.pallas import tpu as pltpu


# ------------------------------------------------------------------- in-kernel helpers

def _bf16(x):
    return x.astype(jnp.bfloat16)


def _layernorm(x, g, b, eps=1e-6):
    # f32 statistics; eps matches partial(nn.LayerNorm, eps=1e-06) in the module.
    mu = jnp.mean(x, axis=-1, keepdims=True)
    var = jnp.mean((x - mu) ** 2, axis=-1, keepdims=True)
    return (x - mu) * lax.rsqrt(var + eps) * g + b


def _erf(x):
    # Abramowitz & Stegun 7.1.26 rational approximation, |err| <= 1.5e-7 in f32.
    # Uses only mul/add/exp, so it never depends on a lax.erf Mosaic lowering.
    a1, a2, a3, a4, a5 = 0.254829592, -0.284496736, 1.421413741, -1.453152027, 1.061405429
    p = 0.3275911
    s = jnp.where(x >= 0.0, 1.0, -1.0)
    ax = jnp.abs(x)
    t = 1.0 / (1.0 + p * ax)
    poly = ((((a5 * t + a4) * t + a3) * t + a2) * t + a1) * t
    return s * (1.0 - poly * jnp.exp(-ax * ax))


def _gelu(x, exact):
    if exact:                                       # nn.GELU default (erf)
        return 0.5 * x * (1.0 + _erf(x * 0.7071067811865476))
    return jax.nn.gelu(x, approximate=True)         # tanh variant -> EUP slot


# ------------------------------------------------ patch-embed + cls + PE + pad (fused)

def _embed_kernel(x_ref, w_ref, b_ref, cls_ref, pe_ref, o_ref, *, n_pad):
    """patch_embed (full-patch Conv3d == Linear) + cls token + PE + pad for one sample."""
    # TODO(synk): assumes the Conv3d weight flattens in row-major (C, D, H, W) order,
    # matching the flattened input patch layout.
    x = _bf16(x_ref[0])                              # f32 HBM read, bf16 cast in VMEM
    xp = jnp.dot(x, w_ref[...], preferred_element_type=jnp.float32) + b_ref[...]
    xp = xp + pe_ref[0]                              # per-patch positional embedding
    L, E = xp.shape
    pieces = [cls_ref[...], xp]                      # cls positional slot is zero
    if n_pad > L + 1:
        pieces.append(jnp.zeros((n_pad - L - 1, E), jnp.float32))
    o_ref[0] = jnp.concatenate(pieces, axis=0)       # (n_pad, E), padding rows = 0


def embed_tokens(x, pos_embed, patch_w, patch_b, cls_token, n_pad):
    """x: (B, L, Din) f32 -> padded token buffer (B, n_pad, E) f32 (cls + PE fused)."""
    B, L, Din = x.shape
    E = patch_w.shape[-1]
    return pl.pallas_call(
        functools.partial(_embed_kernel, n_pad=n_pad),
        out_shape=jax.ShapeDtypeStruct((B, n_pad, E), jnp.float32),
        grid=(B,),
        in_specs=[pl.BlockSpec((1, L, Din), lambda b: (b, 0, 0)),
                  pl.BlockSpec((Din, E), lambda b: (0, 0)),
                  pl.BlockSpec((1, E), lambda b: (0, 0)),
                  pl.BlockSpec((1, E), lambda b: (0, 0)),
                  pl.BlockSpec((1, L, E), lambda b: (0, 0, 0))],
        out_specs=pl.BlockSpec((1, n_pad, E), lambda b: (b, 0, 0)),
        compiler_params=pltpu.CompilerParams(dimension_semantics=("parallel",)),
    )(x, patch_w, patch_b, cls_token, pos_embed)


# --------------------------------------------------------------- fused transformer stack

def _encoder_kernel(num_heads, n_valid, exact_gelu,
                    x_ref,
                    ln1_g, ln1_b, qkv_w, q_b, proj_w, proj_b,
                    ln2_g, ln2_b, fc1_w, fc1_b, fc2_w, fc2_b,
                    norm_g, norm_b,
                    o_ref):
    """All transformer blocks (+ final LayerNorm) for a block of Bb batch elements.

    grid = (B // Bb, depth).  The (Bb, Np, E) activation stays resident in the output
    block across the 'arbitrary' depth axis; per-layer bf16 weights are streamed by the
    pipeline once per Bb samples.
    """
    d = pl.program_id(1)
    depth = pl.num_programs(1)

    @pl.when(d == 0)
    def _():                                   # seed the resident activation once per group
        o_ref[...] = x_ref[...]

    x = o_ref[...]                             # (Bb, Np, E) f32
    Bb, Np, E = x.shape
    nh = num_heads
    hd = E // nh
    M = Bb * Np

    # ---- attention branch: x + proj(MHA(LN1(x))) --------------------------------------
    xn = _bf16(_layernorm(x, ln1_g[0], ln1_b[0])).reshape(M, E)
    # qkv^T for all Bb samples at once: (3E, M).  Both operands contract their last dim,
    # so no explicit xn^T relayout is needed; Np % 128 == 0 keeps M lane-dense.
    qkvT = lax.dot_general(qkv_w[0], xn,
                           dimension_numbers=(((1,), (1,)), ((), ())),
                           preferred_element_type=jnp.float32)           # (3E, M) f32

    # TODO(synk): for token counts >> 512, tile attention over KV blocks (online softmax)
    # to bound the (nh, Np, Np) f32 score temporary.
    ctx_parts = []
    for b in range(Bb):                        # static unroll; lane-tile-aligned slices
        qkv4 = qkvT[:, b * Np:(b + 1) * Np].reshape(3, nh, hd, Np)
        qT, kT, vT = qkv4[0], qkv4[1], qkv4[2]                           # (nh, hd, Np)
        # q bias (1/sqrt(hd) pre-folded) is lane-dense per head; the k bias only adds a
        # per-query constant to all logits (softmax-invariant, dropped at prep); the v
        # bias is folded into proj_b at prep.
        q = _bf16(jnp.swapaxes(qT, 1, 2) + q_b[0])                       # (nh, Np, hd)
        scores = lax.dot_general(q, _bf16(kT),                           # (nh, Nq, Nk) f32
                                 dimension_numbers=(((2,), (1,)), ((0,), (0,))),
                                 preferred_element_type=jnp.float32)
        if n_valid < Np:                       # mask padded key tokens (f32 scores only)
            kmask = lax.broadcasted_iota(jnp.int32, (1, 1, Np), 2) < n_valid
            scores = jnp.where(kmask, scores, -1e30)
        scores = scores - jnp.max(scores, axis=-1, keepdims=True)
        p = jnp.exp(scores)
        # NOTE: approx=True uses the EUP reciprocal; swap to an exact divide if strict
        # parity with PyTorch softmax is required.
        p = p * pl.reciprocal(jnp.sum(p, axis=-1, keepdims=True), approx=True)
        ctxT = lax.dot_general(_bf16(vT), _bf16(p),                      # (nh, hd, Nq)
                               dimension_numbers=(((2,), (2,)), ((0,), (0,))),
                               preferred_element_type=jnp.float32)
        ctx_parts.append(ctxT.reshape(E, Np))                            # heads concat (free)
    ctxT_all = ctx_parts[0] if Bb == 1 else jnp.concatenate(ctx_parts, axis=1)  # (E, M)

    # output projection: contract dim 0 of the transposed context (no explicit transpose).
    attn = lax.dot_general(_bf16(ctxT_all), proj_w[0],
                           dimension_numbers=(((0,), (0,)), ((), ())),
                           preferred_element_type=jnp.float32) + proj_b[0]      # (M, E)
    x = x + attn.reshape(Bb, Np, E)            # attn-dropout / drop-path = identity

    # ---- MLP branch: x + fc2(GELU(fc1(LN2(x)))) ----------------------------------------
    xn = _bf16(_layernorm(x, ln2_g[0], ln2_b[0])).reshape(M, E)
    h = jnp.dot(xn, fc1_w[0], preferred_element_type=jnp.float32) + fc1_b[0]
    h = _gelu(h, exact_gelu)
    h = jnp.dot(_bf16(h), fc2_w[0], preferred_element_type=jnp.float32) + fc2_b[0]
    x = x + h.reshape(Bb, Np, E)

    o_ref[...] = x

    @pl.when(d == depth - 1)                   # fused final LayerNorm
    def _():
        o_ref[...] = _layernorm(x, norm_g[...], norm_b[...])


def _vmem_capacity_bytes():
    try:
        cap = getattr(pltpu.get_tpu_info(), "vmem_capacity_bytes", None)
        if cap:
            return int(cap)
    except Exception:
        pass
    return 64 << 20                            # conservative fallback: v7x per-core VMEM


def _pick_batch_block(B, Np, E, H, nh, max_bb=8):
    """Largest batch block (divisor of B, <= max_bb) whose rough footprint fits ~80% of
    the per-core VMEM, plus an explicit generation-aware vmem_limit_bytes."""
    cap = int(_vmem_capacity_bytes() * 0.8)
    f32, bf16 = 4, 2

    def footprint(bb):
        m = bb * Np
        weights = 2 * ((4 * E * E + 2 * E * H) * bf16 + (8 * E + H) * f32)   # double-buffered
        act = 4 * bb * Np * E * f32                  # input block + resident output block
        tmp = (m * E * (f32 + bf16)                  # LayerNorm output (+ bf16 copy)
               + 3 * E * m * f32                     # qkv^T
               + 2 * nh * Np * Np * f32              # scores + probs (one sample live)
               + 2 * m * E * f32                     # context + attention output
               + m * H * (f32 + bf16))               # MLP hidden
        return int(weights + act + tmp)

    bb = 1
    for cand in range(min(B, max_bb), 0, -1):
        if B % cand == 0 and footprint(cand) <= cap:
            bb = cand
            break
    return bb, cap


def encoder_forward(tokens, enc, num_heads, n_valid, *, exact_gelu=True):
    """tokens: (B, Np, E) f32 (Np a multiple of 128) -> (B, Np, E) f32 (final LN applied)."""
    B, Np, E = tokens.shape
    depth, _, H = enc["fc1_w"].shape
    Bb, vmem_limit = _pick_batch_block(B, Np, E, H, num_heads)

    wspec = lambda r, c: pl.BlockSpec((1, r, c), lambda g, d: (d, 0, 0))   # depth-stacked
    cspec = lambda r, c: pl.BlockSpec((r, c), lambda g, d: (0, 0))         # grid-constant

    # TODO(synk): on v7x, if the profile shows one TensorCore idle, mark the batch axis
    # pltpu.CORE_PARALLEL (2 TCs/chip); "parallel" is sufficient on v5e/v6e (1 TC/chip).
    return pl.pallas_call(
        functools.partial(_encoder_kernel, num_heads, n_valid, exact_gelu),
        out_shape=jax.ShapeDtypeStruct((B, Np, E), jnp.float32),
        grid=(B // Bb, depth),
        in_specs=[pl.BlockSpec((Bb, Np, E), lambda g, d: (g, 0, 0)),
                  wspec(1, E), wspec(1, E),                       # ln1 gamma/beta
                  wspec(3 * E, E),                                # qkv weight (out, in)
                  pl.BlockSpec((1, num_heads, 1, E // num_heads),
                               lambda g, d: (d, 0, 0, 0)),        # q bias (lane-dense)
                  wspec(E, E), wspec(1, E),                       # proj weight / bias(+v bias)
                  wspec(1, E), wspec(1, E),                       # ln2 gamma/beta
                  wspec(E, H), wspec(1, H),                       # fc1 weight/bias
                  wspec(H, E), wspec(1, E),                       # fc2 weight/bias
                  cspec(1, E), cspec(1, E)],                      # final norm gamma/beta
        out_specs=pl.BlockSpec((Bb, Np, E), lambda g, d: (g, 0, 0)),
        compiler_params=pltpu.CompilerParams(
            dimension_semantics=("parallel", "arbitrary"),
            vmem_limit_bytes=vmem_limit),
    )(tokens, enc["ln1_g"], enc["ln1_b"], enc["qkv_w"], enc["q_b"],
      enc["proj_w"], enc["proj_b"], enc["ln2_g"], enc["ln2_b"],
      enc["fc1_w"], enc["fc1_b"], enc["fc2_w"], enc["fc2_b"],
      enc["norm_g"], enc["norm_b"])


# ------------------------------------------------------------------------- model glue

def vit_encoder_forward(x, pos_embed, params, *, exact_gelu=True):
    """x: (B, L, Din) f32, pos_embed: (1, L, E) f32 -> cls features (B, E) f32."""
    B, L, _ = x.shape
    n_valid = L + 1                              # cls token + L patch tokens
    n_pad = -(-n_valid // 128) * 128             # pad tokens to full 128-lane tiles
    tokens = embed_tokens(x, pos_embed, params["patch_w"], params["patch_b"],
                          params["cls_token"], n_pad)
    out = encoder_forward(tokens, params["encoder"], params["num_heads"], n_valid,
                          exact_gelu=exact_gelu)
    return out[:, 0, :]                          # head = Identity on the cls token


# --------------------------------------------------------------------- parameter init

def _xavier_uniform(key, fan_in, fan_out, shape):
    bound = (6.0 / (fan_in + fan_out)) ** 0.5
    return jax.random.uniform(key, shape, jnp.float32, -bound, bound)


def init_raw_params(key, *, embed_dim, depth, num_heads, mlp_ratio, in_dim):
    """PyTorch-equivalent initialization, weights stored in (in, out) layout."""
    E, H = embed_dim, int(embed_dim * mlp_ratio)
    assert E % num_heads == 0, "embed_dim must be divisible by num_heads"
    k_pw, k_pb, k_cls, k_blk = jax.random.split(key, 4)
    raw = {
        "patch_w": _xavier_uniform(k_pw, in_dim, E, (in_dim, E)),
        "patch_b": jax.random.uniform(k_pb, (1, E), jnp.float32,
                                      -1.0 / in_dim ** 0.5, 1.0 / in_dim ** 0.5),
        "cls_token": 0.02 * jax.random.normal(k_cls, (1, 1, E), jnp.float32),
        "norm_g": jnp.ones((1, E), jnp.float32),
        "norm_b": jnp.zeros((1, E), jnp.float32),
        "blocks": [],
    }
    for bk in jax.random.split(k_blk, depth):
        kq, kp, k1, k2 = jax.random.split(bk, 4)
        raw["blocks"].append({
            "ln1_g": jnp.ones((1, E), jnp.float32), "ln1_b": jnp.zeros((1, E), jnp.float32),
            "qkv_w": _xavier_uniform(kq, E, 3 * E, (E, 3 * E)),
            "qkv_b": jnp.zeros((1, 3 * E), jnp.float32),
            "proj_w": _xavier_uniform(kp, E, E, (E, E)),
            "proj_b": jnp.zeros((1, E), jnp.float32),
            "ln2_g": jnp.ones((1, E), jnp.float32), "ln2_b": jnp.zeros((1, E), jnp.float32),
            "fc1_w": _xavier_uniform(k1, E, H, (E, H)),
            "fc1_b": jnp.zeros((1, H), jnp.float32),
            "fc2_w": _xavier_uniform(k2, H, E, (H, E)),
            "fc2_b": jnp.zeros((1, E), jnp.float32),
        })
    return raw


def prep_encoder_params(raw, num_heads):
    """Stack per-block params over depth, fold the 1/sqrt(head_dim) scale into the q
    projection, drop the (softmax-invariant) k bias, fold the v bias into the output
    projection bias, and cast matmul weights to bf16 (accumulation stays f32)."""
    E = raw["norm_g"].shape[-1]
    hd = E // num_heads
    scale = hd ** -0.5
    stack = lambda f: jnp.stack([f(b) for b in raw["blocks"]], axis=0)

    qscale = jnp.concatenate([jnp.full((E, 1), scale, jnp.float32),
                              jnp.ones((2 * E, 1), jnp.float32)], axis=0)
    qkv_w = stack(lambda b: b["qkv_w"].T) * qscale[None]            # (depth, 3E, E), (out,in)
    q_b = stack(lambda b: (b["qkv_b"][0, :E] * scale).reshape(num_heads, 1, hd))
    proj_b = stack(lambda b: b["proj_b"] + b["qkv_b"][:, 2 * E:] @ b["proj_w"])

    return {
        "ln1_g": stack(lambda b: b["ln1_g"]), "ln1_b": stack(lambda b: b["ln1_b"]),
        "qkv_w": qkv_w.astype(jnp.bfloat16), "q_b": q_b,
        "proj_w": stack(lambda b: b["proj_w"]).astype(jnp.bfloat16),
        "proj_b": proj_b,
        "ln2_g": stack(lambda b: b["ln2_g"]), "ln2_b": stack(lambda b: b["ln2_b"]),
        "fc1_w": stack(lambda b: b["fc1_w"]).astype(jnp.bfloat16),
        "fc1_b": stack(lambda b: b["fc1_b"]),
        "fc2_w": stack(lambda b: b["fc2_w"]).astype(jnp.bfloat16),
        "fc2_b": stack(lambda b: b["fc2_b"]),
        "norm_g": raw["norm_g"], "norm_b": raw["norm_b"],
    }


# -------------------------------------------------------------------------------- main

if __name__ == "__main__":
    B, L, in_dim = 2, 8, 48          # Din = in_chans * prod(patch_size), flattened patch
    E, depth, heads, mlp_ratio = 32, 2, 4, 4.0

    key = jax.random.PRNGKey(0)
    kx, kpe, kparam = jax.random.split(key, 3)
    x = jax.random.normal(kx, (B, L, in_dim), jnp.float32)
    pos_embed = jax.random.normal(kpe, (1, L, E), jnp.float32)   # per-patch PE (no cls slot)

    raw = init_raw_params(kparam, embed_dim=E, depth=depth, num_heads=heads,
                          mlp_ratio=mlp_ratio, in_dim=in_dim)
    params = {
        "num_heads": heads,
        "cls_token": raw["cls_token"].reshape(1, E),
        "patch_w": raw["patch_w"].astype(jnp.bfloat16),
        "patch_b": raw["patch_b"],
        "encoder": prep_encoder_params(raw, heads),
    }

    out = vit_encoder_forward(x, pos_embed, params)
    out = jax.block_until_ready(out)
    assert out.shape == (B, E) and out.dtype == jnp.float32
    assert bool(jnp.all(jnp.isfinite(out)))
    print("KERNEL_OK")
</pallas_src>

<mosaic_0001>
module attributes {stable_mosaic.version = 11 : i64} {
  func.func @_embed_kernel(%arg0: i32, %arg1: memref<1x8x48xf32, #tpu.memory_space<vmem>>, %arg2: memref<48x32xbf16, #tpu.memory_space<vmem>>, %arg3: memref<1x32xf32, #tpu.memory_space<vmem>>, %arg4: memref<1x32xf32, #tpu.memory_space<vmem>>, %arg5: memref<1x8x32xf32, #tpu.memory_space<vmem>>, %arg6: memref<1x128x32xf32, #tpu.memory_space<vmem>>) attributes {dimension_semantics = [#tpu.dimension_semantics<parallel>], iteration_bounds = array<i64: 2>, scalar_prefetch = 0 : i64, scratch_operands = 0 : i64, tpu.core_type = #tpu.core_type<tc>, window_params = [{transform_indices = @transform_0, window_bounds = array<i64: 1, 8, 48>}, {pipeline_mode = #tpu.pipeline_mode<synchronous>, transform_indices = @transform_1, window_bounds = array<i64: 48, 32>}, {pipeline_mode = #tpu.pipeline_mode<synchronous>, transform_indices = @transform_2, window_bounds = array<i64: 1, 32>}, {pipeline_mode = #tpu.pipeline_mode<synchronous>, transform_indices = @transform_3, window_bounds = array<i64: 1, 32>}, {pipeline_mode = #tpu.pipeline_mode<synchronous>, transform_indices = @transform_4, window_bounds = array<i64: 1, 8, 32>}, {transform_indices = @transform_5, window_bounds = array<i64: 1, 128, 32>}]} {
    %c0 = arith.constant 0 : index
    %c0_0 = arith.constant 0 : index
    %c0_1 = arith.constant 0 : index
    %0 = vector.load %arg1[%c0, %c0_0, %c0_1] : memref<1x8x48xf32, #tpu.memory_space<vmem>>, vector<1x8x48xf32>
    %1 = vector.shape_cast %0 : vector<1x8x48xf32> to vector<8x48xf32>
    %2 = arith.truncf %1 : vector<8x48xf32> to vector<8x48xbf16>
    %c0_2 = arith.constant 0 : index
    %c0_3 = arith.constant 0 : index
    %3 = vector.load %arg2[%c0_2, %c0_3] : memref<48x32xbf16, #tpu.memory_space<vmem>>, vector<48x32xbf16>
    %cst = arith.constant dense<0.000000e+00> : vector<8x32xf32>
    %4 = tpu.matmul %2, %3, %cst {dimension_numbers = #tpu.dot_dimension_numbers<[1], [0], [0], [1], [0, 0, 1, 1], [], []>} : vector<8x48xbf16>, vector<48x32xbf16>, vector<8x32xf32> -> vector<8x32xf32>
    %c0_4 = arith.constant 0 : index
    %c0_5 = arith.constant 0 : index
    %5 = vector.load %arg3[%c0_4, %c0_5] : memref<1x32xf32, #tpu.memory_space<vmem>>, vector<1x32xf32>
    %6 = vector.broadcast %5 : vector<1x32xf32> to vector<8x32xf32>
    %7 = arith.addf %4, %6 : vector<8x32xf32>
    %c0_6 = arith.constant 0 : index
    %c0_7 = arith.constant 0 : index
    %c0_8 = arith.constant 0 : index
    %8 = vector.load %arg5[%c0_6, %c0_7, %c0_8] : memref<1x8x32xf32, #tpu.memory_space<vmem>>, vector<1x8x32xf32>
    %9 = vector.shape_cast %8 : vector<1x8x32xf32> to vector<8x32xf32>
    %10 = arith.addf %7, %9 : vector<8x32xf32>
    %c0_9 = arith.constant 0 : index
    %c0_10 = arith.constant 0 : index
    %11 = vector.load %arg4[%c0_9, %c0_10] : memref<1x32xf32, #tpu.memory_space<vmem>>, vector<1x32xf32>
    %cst_11 = arith.constant 0.000000e+00 : f32
    %12 = vector.broadcast %cst_11 : f32 to vector<119x32xf32>
    %13 = tpu.concatenate %11, %10, %12 in 0 : vector<1x32xf32>, vector<8x32xf32>, vector<119x32xf32> -> vector<128x32xf32>
    %c0_12 = arith.constant 0 : index
    %c0_13 = arith.constant 0 : index
    %c0_14 = arith.constant 0 : index
    %14 = vector.load %arg6[%c0_12, %c0_13, %c0_14] : memref<1x128x32xf32, #tpu.memory_space<vmem>>, vector<1x128x32xf32>
    %15 = vector.shape_cast %14 : vector<1x128x32xf32> to vector<128x32xf32>
    %16 = vector.shape_cast %13 : vector<128x32xf32> to vector<1x128x32xf32>
    tpu.vector_store %arg6[%c0_12, %c0_13, %c0_14], %16 {strides = array<i32>} : memref<1x128x32xf32, #tpu.memory_space<vmem>>, vector<1x128x32xf32>,
    return
  }
  func.func @transform_0(%arg0: i32) -> (i32, i32, i32) {
    %c0_i32 = arith.constant 0 : i32
    %c0_i32_0 = arith.constant 0 : i32
    %c0_i32_1 = arith.constant 0 : i32
    return %arg0, %c0_i32, %c0_i32_0 : i32, i32, i32
  }
  func.func @transform_1(%arg0: i32) -> (i32, i32) {
    %c0_i32 = arith.constant 0 : i32
    %c0_i32_0 = arith.constant 0 : i32
    %c0_i32_1 = arith.constant 0 : i32
    return %c0_i32, %c0_i32_0 : i32, i32
  }
  func.func @transform_2(%arg0: i32) -> (i32, i32) {
    %c0_i32 = arith.constant 0 : i32
    %c0_i32_0 = arith.constant 0 : i32
    %c0_i32_1 = arith.constant 0 : i32
    return %c0_i32, %c0_i32_0 : i32, i32
  }
  func.func @transform_3(%arg0: i32) -> (i32, i32) {
    %c0_i32 = arith.constant 0 : i32
    %c0_i32_0 = arith.constant 0 : i32
    %c0_i32_1 = arith.constant 0 : i32
    return %c0_i32, %c0_i32_0 : i32, i32
  }
  func.func @transform_4(%arg0: i32) -> (i32, i32, i32) {
    %c0_i32 = arith.constant 0 : i32
    %c0_i32_0 = arith.constant 0 : i32
    %c0_i32_1 = arith.constant 0 : i32
    %c0_i32_2 = arith.constant 0 : i32
    return %c0_i32, %c0_i32_0, %c0_i32_1 : i32, i32, i32
  }
  func.func @transform_5(%arg0: i32) -> (i32, i32, i32) {
    %c0_i32 = arith.constant 0 : i32
    %c0_i32_0 = arith.constant 0 : i32
    %c0_i32_1 = arith.constant 0 : i32
    return %arg0, %c0_i32, %c0_i32_0 : i32, i32, i32
  }
}

</mosaic_0001>

<llo_original>
// kernel: tpu_custom_call.1
$region0: #{tpu_custom_call.1}
  #allocation0 [shape = 'u32[]', space=smem, size = 0x4, offset = 0x4, fixed_abs, tag = 'smem constant byte address 0x4 - core index']
  #allocation1 [shape = 'u32[144,128]{1,0:T(1,128)}', space=vmem, size = 0x12000, scoped, tag = 'internal scratch']
  %s0 = inlined_call_operand.vmem [shape: f32[2,8,48], index: 0, kind: input, shape index: {}]
  %s1 = inlined_call_operand.vmem [shape: bf16[48,32], index: 1, kind: input, shape index: {}]
  %s2 = inlined_call_operand.vmem [shape: f32[1,32], index: 2, kind: input, shape index: {}]
  %s3 = inlined_call_operand.vmem [shape: f32[1,32], index: 3, kind: input, shape index: {}]
  %s4 = inlined_call_operand.vmem [shape: f32[1,8,32], index: 4, kind: input, shape index: {}]
  %s5 = inlined_call_operand.vmem [shape: f32[2,128,32], index: 5, kind: output, shape index: {}]
  %s6 = sld [smem:[#allocation0]]
  $region53: #{tpu_custom_call.1} parent=0
    _
  %s8 = ssub.s32 1, %s6
  %s9 = scalar_select 0, %s8, %s6
  loop: start=0, step=1, limit=4
  $region2: #{tpu_custom_call.1} parent=0 // loop_pre_header
    _
  $region3: #{tpu_custom_call.1} parent=0 // loop_header
    %s11 = sphi 0, %s15
    %p12 = scmp.ge.s32.totalorder %s11, 4
    %s21 = sphi 0, %s23
    %s24 = sphi 0, %s21
    %s25 = sphi 0, %s24
    %s41 = sphi 0, %s25
    %s45 = sphi 0, %s45
    %s47 = sphi 0, %s45
    %s48 = sphi 0, %s47
    %s62 = sphi 0, %s48
    %s66 = sphi 0, %s66
    %s68 = sphi 0, %s66
    %s69 = sphi 0, %s68
    %s83 = sphi 0, %s69
    %s87 = sphi 0, %s87
    %s89 = sphi 0, %s87
    %s90 = sphi 0, %s89
    %s104 = sphi 0, %s90
    %s108 = sphi 0, %s108
    %s110 = sphi 0, %s108
    %s111 = sphi 0, %s110
    %s125 = sphi 0, %s111
    %s131 = sphi 0, %s133
    %s134 = sphi 0, %s131
    %s135 = sphi 0, %s134
    %s151 = sphi 0, %s135
  $region4: #{tpu_custom_call.1} parent=0 // loop_header_branch
    %14 = sbr.rel (%p12) target = $region8
  $region5: #{tpu_custom_call.1} parent=0 // loop_body
    %s16 = ssub.s32 %s11, 1
    %s17 = ssub.s32 %s11, 2
    %s18 = sadd.s32 %s11, 1
    %s19 = ssub.s32 %s11, %s18
    %p20 = scmp.eq.s32.totalorder %s19, 0
    %s22 = sadd.s32 %s21, 1
    %s23 = scalar_select %p20, %s21, %s22
    %p26 = pneg %p20
    %p27 = scmp.eq.s32.totalorder %s11, 1
    %p28 = por %p26, %p27
    %p29 = scmp.ne.s32.totalorder %s21, %s24
    %p30 = scmp.eq.s32.totalorder %s11, 0
    %p31 = por %p29, %p30
    %p32 = scmp.ne.s32.totalorder %s21, %s24
    %p33 = scmp.eq.s32.totalorder %s16, 1
    %p34 = por %p32, %p33
    %p35 = scmp.ne.s32.totalorder %s24, %s25
    %p36 = scmp.eq.s32.totalorder %s16, 0
    %p37 = por %p35, %p36
    %p38 = scmp.ne.s32.totalorder %s24, %s25
    %p39 = scmp.eq.s32.totalorder %s17, 1
    %p40 = por %p38, %p39
    %p42 = scmp.ne.s32.totalorder %s25, %s41
    %p43 = scmp.eq.s32.totalorder %s17, 0
    %p44 = por %p42, %p43
    %s46 = sadd.s32 %s45, 1
    %p49 = scmp.eq.s32.totalorder %s11, 1
    %p50 = scmp.ne.s32.totalorder %s45, %s47
    %p51 = scmp.eq.s32.totalorder %s11, 0
    %p52 = por %p50, %p51
    %p53 = scmp.ne.s32.totalorder %s45, %s47
    %p54 = scmp.eq.s32.totalorder %s16, 1
    %p55 = por %p53, %p54
    %p56 = scmp.ne.s32.totalorder %s47, %s48
    %p57 = scmp.eq.s32.totalorder %s16, 0
    %p58 = por %p56, %p57
    %p59 = scmp.ne.s32.totalorder %s47, %s48
    %p60 = scmp.eq.s32.totalorder %s17, 1
    %p61 = por %p59, %p60
    %p63 = scmp.ne.s32.totalorder %s48, %s62
    %p64 = scmp.eq.s32.totalorder %s17, 0
    %p65 = por %p63, %p64
    %s67 = sadd.s32 %s66, 1
    %p70 = scmp.eq.s32.totalorder %s11, 1
    %p71 = scmp.ne.s32.totalorder %s66, %s68
    %p72 = scmp.eq.s32.totalorder %s11, 0
    %p73 = por %p71, %p72
    %p74 = scmp.ne.s32.totalorder %s66, %s68
    %p75 = scmp.eq.s32.totalorder %s16, 1
    %p76 = por %p74, %p75
    %p77 = scmp.ne.s32.totalorder %s68, %s69
    %p78 = scmp.eq.s32.totalorder %s16, 0
    %p79 = por %p77, %p78
    %p80 = scmp.ne.s32.totalorder %s68, %s69
    %p81 = scmp.eq.s32.totalorder %s17, 1
    %p82 = por %p80, %p81
    %p84 = scmp.ne.s32.totalorder %s69, %s83
    %p85 = scmp.eq.s32.totalorder %s17, 0
    %p86 = por %p84, %p85
    %s88 = sadd.s32 %s87, 1
    %p91 = scmp.eq.s32.totalorder %s11, 1
    %p92 = scmp.ne.s32.totalorder %s87, %s89
    %p93 = scmp.eq.s32.totalorder %s11, 0
    %p94 = por %p92, %p93
    %p95 = scmp.ne.s32.totalorder %s87, %s89
    %p96 = scmp.eq.s32.totalorder %s16, 1
    %p97 = por %p95, %p96
    %p98 = scmp.ne.s32.totalorder %s89, %s90
    %p99 = scmp.eq.s32.totalorder %s16, 0
    %p100 = por %p98, %p99
    %p101 = scmp.ne.s32.totalorder %s89, %s90
    %p102 = scmp.eq.s32.totalorder %s17, 1
    %p103 = por %p101, %p102
    %p105 = scmp.ne.s32.totalorder %s90, %s104
    %p106 = scmp.eq.s32.totalorder %s17, 0
    %p107 = por %p105, %p106
    %s109 = sadd.s32 %s108, 1
    %p112 = scmp.eq.s32.totalorder %s11, 1
    %p113 = scmp.ne.s32.totalorder %s108, %s110
    %p114 = scmp.eq.s32.totalorder %s11, 0
    %p115 = por %p113, %p114
    %p116 = scmp.ne.s32.totalorder %s108, %s110
    %p117 = scmp.eq.s32.totalorder %s16, 1
    %p118 = por %p116, %p117
    %p119 = scmp.ne.s32.totalorder %s110, %s111
    %p120 = scmp.eq.s32.totalorder %s16, 0
    %p121 = por %p119, %p120
    %p122 = scmp.ne.s32.totalorder %s110, %s111
    %p123 = scmp.eq.s32.totalorder %s17, 1
    %p124 = por %p122, %p123
    %p126 = scmp.ne.s32.totalorder %s111, %s125
    %p127 = scmp.eq.s32.totalorder %s17, 0
    %p128 = por %p126, %p127
    %s129 = ssub.s32 %s11, %s18
    %p130 = scmp.eq.s32.totalorder %s129, 0
    %s132 = sadd.s32 %s131, 1
    %s133 = scalar_select %p130, %s131, %s132
    %p136 = pneg %p130
    %p137 = scmp.eq.s32.totalorder %s11, 1
    %p138 = por %p136, %p137
    %p139 = scmp.ne.s32.totalorder %s131, %s134
    %p140 = scmp.eq.s32.totalorder %s11, 0
    %p141 = por %p139, %p140
    %p142 = scmp.ne.s32.totalorder %s131, %s134
    %p143 = scmp.eq.s32.totalorder %s16, 1
    %p144 = por %p142, %p143
    %p145 = scmp.ne.s32.totalorder %s134, %s135
    %p146 = scmp.eq.s32.totalorder %s16, 0
    %p147 = por %p145, %p146
    %p148 = scmp.ne.s32.totalorder %s134, %s135
    %p149 = scmp.eq.s32.totalorder %s17, 1
    %p150 = por %p148, %p149
    %p152 = scmp.ne.s32.totalorder %s135, %s151
    %p153 = scmp.eq.s32.totalorder %s17, 0
    %p154 = por %p152, %p153
    %p155 = scmp.le.s32.totalorder 1, %s11
    %p156 = scmp.lt.s32.totalorder %s11, 3
    %p157 = pnand %p155, %p156
    %p158 = pneg %p157
    // Predicated region
    $region9: #{tpu_custom_call.1} parent=5 // pred_check
      _
    $region10: #{tpu_custom_call.1} parent=5 // pred_check_branch
      %160 = sbr.rel (%p157) target = $region12
    $region11: #{tpu_custom_call.1} parent=5 // pred_region
      %s161 = ssub.s32 %s11, 1
      // Predicated region
      $region13: #{tpu_custom_call.1} parent=11 // pred_check
        %p162 = pneg %p58
      $region14: #{tpu_custom_call.1} parent=11 // pred_check_branch
        %164 = sbr.rel (%p162) target = $region16
      $region15: #{tpu_custom_call.1} parent=11 // pred_region
        _
      $region16: #{tpu_custom_call.1} parent=11 // pred_fallthru
        _
      // Predicated region
      $region17: #{tpu_custom_call.1} parent=11 // pred_check
        %p165 = pneg %p79
      $region18: #{tpu_custom_call.1} parent=11 // pred_check_branch
        %167 = sbr.rel (%p165) target = $region20
      $region19: #{tpu_custom_call.1} parent=11 // pred_region
        _
      $region20: #{tpu_custom_call.1} parent=11 // pred_fallthru
        _
      // Predicated region
      $region21: #{tpu_custom_call.1} parent=11 // pred_check
        %p168 = pneg %p100
      $region22: #{tpu_custom_call.1} parent=11 // pred_check_branch
        %170 = sbr.rel (%p168) target = $region24
      $region23: #{tpu_custom_call.1} parent=11 // pred_region
        _
      $region24: #{tpu_custom_call.1} parent=11 // pred_fallthru
        _
      // Predicated region
      $region25: #{tpu_custom_call.1} parent=11 // pred_check
        %p171 = pneg %p121
      $region26: #{tpu_custom_call.1} parent=11 // pred_check_branch
        %173 = sbr.rel (%p171) target = $region28
      $region27: #{tpu_custom_call.1} parent=11 // pred_region
        _
      $region28: #{tpu_custom_call.1} parent=11 // pred_fallthru
        _
    $region12: #{tpu_custom_call.1} parent=5 // pred_fallthru
      _
    %p174 = scmp.lt.s32.totalorder %s11, 2
    // Predicated region
    $region29: #{tpu_custom_call.1} parent=5 // pred_check
      %p175 = pneg %p174
    $region30: #{tpu_custom_call.1} parent=5 // pred_check_branch
      %177 = sbr.rel (%p175) target = $region32
    $region31: #{tpu_custom_call.1} parent=5 // pred_region
      // Predicated region
      $region33: #{tpu_custom_call.1} parent=31 // pred_check
        %p178 = pneg %p31
      $region34: #{tpu_custom_call.1} parent=31 // pred_check_branch
        %180 = sbr.rel (%p178) target = $region36
      $region35: #{tpu_custom_call.1} parent=31 // pred_region
        %p181 = scmp.lt.s32.totalorder %s11, 1
        %s182 = scalar_select %p181, %s11, 1
        %s183 = smul.addr %s182, 8
        %s184 = scalar_lea.vmem %s0, %s183
      $region36: #{tpu_custom_call.1} parent=31 // pred_fallthru
        _
    $region32: #{tpu_custom_call.1} parent=5 // pred_fallthru
      _
    %p185 = scmp.le.s32.totalorder 1, %s11
    %p186 = scmp.lt.s32.totalorder %s11, 3
    %p187 = pnand %p185, %p186
    %p188 = pneg %p187
    // Predicated region
    $region37: #{tpu_custom_call.1} parent=5 // pred_check
      _
    $region38: #{tpu_custom_call.1} parent=5 // pred_check_branch
      %190 = sbr.rel (%p187) target = $region40
    $region39: #{tpu_custom_call.1} parent=5 // pred_region
      %s191 = ssub.s32 %s11, 1
      %p192 = scmp.lt.s32.totalorder %s16, 1
      %s193 = scalar_select %p192, %s16, 1
      %s194 = smul.addr %s193, 8
      %s195 = scalar_lea.vmem %s0, %s194
      %p196 = pneg %p37
      %p197 = pneg %p34
      %p198 = pneg %p58
      %p199 = pneg %p55
      %p200 = pneg %p79
      %p201 = pneg %p76
      %p202 = pneg %p100
      %p203 = pneg %p97
      %p204 = pneg %p121
      %p205 = pneg %p118
      %p206 = pneg %p147
      %p207 = pneg %p144
      %p208 = scmp.lt.s32.totalorder %s16, 1
      %s209 = scalar_select %p208, %s16, 1
      %s210 = smul.addr %s209, 16
      %s211 = smul.addr %s210, 8
      %s212 = scalar_lea.vmem %s5, %s211
      %p213 = scmp.lt.s32.totalorder %s16, 1
      %s214 = scalar_select %p213, %s16, 1
      %s215 = smul.addr %s214, 8
      %s216 = scalar_lea.vmem %s0, %s215
      %p217 = scmp.lt.s32.totalorder %s16, 1
      %s218 = scalar_select %p217, %s16, 1
      %s219 = smul.addr %s218, 16
      %s220 = smul.addr %s219, 8
      %s221 = scalar_lea.vmem %s5, %s220
      %v223 = vld [vmem:[%s216] sm:$0xff]
      %v224 = vpack.c.bf16 %v223, %v223
      %v225 = vld [vmem:[%s1] sm:$0xf]
      %v226 = vld [vmem:[%s1 + $0x4] sm:$0xf]
      %v227 = vld [vmem:[%s1 + $0x8] sm:$0xf]
      %v228 = vld [vmem:[%s1 + $0xc] sm:$0xf]
      %v229 = vld [vmem:[%s1 + $0x10] sm:$0xf]
      %v230 = vld [vmem:[%s1 + $0x14] sm:$0xf]
      %v231 = vld [vmem:[%s2] sm:$0x1]
      %v233 = vlaneseq
      %v234 = vshrl.u32 %v233, 7
      %v235 = vsub.s32 0, %v234
      %v236 = vrot.slane %v231, %v235
      %v244 = vunpack.c.l.b16 %v225
      %v245 = vunpack.c.l.b16 %v226
      %v246 = vunpack.c.l.b16 %v227
      %v247 = vunpack.c.l.b16 %v228
      %v248 = vunpack.c.l.b16 %v229
      %v249 = vunpack.c.l.b16 %v230
      %v250 = vpack.c.b16 %v245, %v244
      %v251 = vpack.c.b16 %v247, %v246
      %v252 = vpack.c.b16 %v249, %v248
      %vm256 = vcmask 392192
      %v258 = vsel %vm256, %v224, 0
      %260 = vmatprep.subr.bf16.mxu0 0
      %261 = vmatpush1.bf16.msra.mxu0 %v250
      %262 = vmatprep.subr.bf16.mxu0 0
      %263 = vmatpush1.bf16.msra.mxu0 %v251
      %264 = vmatprep.subr.bf16.mxu0 0
      %265 = vmatpush1.bf16.msra.mxu0 %v252
      %266 = vmatprep.subr.bf16.mxu0 0
      %267 = vmatpush1.bf16.msra.mxu0 0
      %268 = vmatprep.subr.bf16.mxu0 0
      %269 = vmatpush1.bf16.msra.mxu0 0
      %270 = vmatprep.subr.bf16.mxu0 0
      %271 = vmatpush1.bf16.msra.mxu0 0
      %272 = vmatprep.subr.bf16.mxu0 0
      %273 = vmatpush1.bf16.msra.mxu0 0
      %274 = vmatprep.subr.bf16.mxu0 0
      %275 = vmatpush1.bf16.msra.mxu0 0
      %276 = vmatprep.subr.bf16.mxu0 0
      %277 = vmatpush1.bf16.msra.mxu0 0
      %278 = vmatprep.subr.bf16.mxu0 0
      %279 = vmatpush1.bf16.msra.mxu0 0
      %280 = vmatprep.subr.bf16.mxu0 0
      %281 = vmatpush1.bf16.msra.mxu0 0
      %282 = vmatprep.subr.bf16.mxu0 0
      %283 = vmatpush1.bf16.msra.mxu0 0
      %284 = vmatprep.subr.bf16.mxu0 0
      %285 = vmatpush1.bf16.msra.mxu0 0
      %286 = vmatprep.subr.bf16.mxu0 0
      %287 = vmatpush1.bf16.msra.mxu0 0
      %288 = vmatprep.subr.bf16.mxu0 0
      %289 = vmatpush1.bf16.msra.mxu0 0
      %290 = vmatprep.subr.bf16.mxu0 0
      %291 = vmatpush1.bf16.msra.mxu0 0
      %292 = vmatprep.mubr.bf16.mxu0 0
      %293 = vmatmul.mubr.bf16.gmra.mrb[0].mxu0 %v258
      %v294 = vpop.f32.mrb[0].mxu0
      %v295 = vadd.f32 %v236, %v294
      %v296 = vpop.f32.mrb[0].mxu0
      %v297 = vpop.f32.mrb[0].mxu0
      %v298 = vpop.f32.mrb[0].mxu0
      %299 = vdwg.mxu0
      %v300 = vld [vmem:[%s4] sm:$0xff]
      %v301 = vadd.f32 %v295, %v300
      %v302 = vld [vmem:[%s3] sm:$0x1]
      %v304 = vrot.slane %v301, 7
      %vm306 = vcmask 1040384
      %v307 = vsel %vm306, %v302, %v304
      %v308 = vsel %vm306, %v304, 0.0
      %vm309 = vcmask 261120
      %310 = vst.msk [vmem:[%s221] sm:$0xff] %vm309, %v307
      %311 = vst.msk [vmem:[%s221 + $0x8] sm:$0xff] %vm309, %v308
      %312 = vst.msk [vmem:[%s221 + $0x10] sm:$0xff] %vm309, 0.0
      %313 = vst.msk [vmem:[%s221 + $0x18] sm:$0xff] %vm309, 0.0
      %314 = vst.msk [vmem:[%s221 + $0x20] sm:$0xff] %vm309, 0.0
      %315 = vst.msk [vmem:[%s221 + $0x28] sm:$0xff] %vm309, 0.0
      %316 = vst.msk [vmem:[%s221 + $0x30] sm:$0xff] %vm309, 0.0
      %317 = vst.msk [vmem:[%s221 + $0x38] sm:$0xff] %vm309, 0.0
      %318 = vst.msk [vmem:[%s221 + $0x40] sm:$0xff] %vm309, 0.0
      %319 = vst.msk [vmem:[%s221 + $0x48] sm:$0xff] %vm309, 0.0
      %320 = vst.msk [vmem:[%s221 + $0x50] sm:$0xff] %vm309, 0.0
      %321 = vst.msk [vmem:[%s221 + $0x58] sm:$0xff] %vm309, 0.0
      %322 = vst.msk [vmem:[%s221 + $0x60] sm:$0xff] %vm309, 0.0
      %323 = vst.msk [vmem:[%s221 + $0x68] sm:$0xff] %vm309, 0.0
      %324 = vst.msk [vmem:[%s221 + $0x70] sm:$0xff] %vm309, 0.0
      %325 = vst.msk [vmem:[%s221 + $0x78] sm:$0xff] %vm309, 0.0
      %p326 = scmp.lt.s32.totalorder %s16, 1
      %s327 = scalar_select %p326, %s16, 1
      %s328 = smul.addr %s327, 16
      %s329 = smul.addr %s328, 8
      %s330 = scalar_lea.vmem %s5, %s329
      // Predicated region
      $region41: #{tpu_custom_call.1} parent=39 // pred_check
        %p331 = pneg %p144
      $region42: #{tpu_custom_call.1} parent=39 // pred_check_branch
        %333 = sbr.rel (%p331) target = $region44
      $region43: #{tpu_custom_call.1} parent=39 // pred_region
        _
      $region44: #{tpu_custom_call.1} parent=39 // pred_fallthru
        _
    $region40: #{tpu_custom_call.1} parent=5 // pred_fallthru
      _
    %p334 = scmp.le.s32.totalorder 2, %s11
    // Predicated region
    $region45: #{tpu_custom_call.1} parent=5 // pred_check
      %p335 = pneg %p334
    $region46: #{tpu_custom_call.1} parent=5 // pred_check_branch
      %337 = sbr.rel (%p335) target = $region48
    $region47: #{tpu_custom_call.1} parent=5 // pred_region
      %s338 = ssub.s32 %s11, 2
      // Predicated region
      $region49: #{tpu_custom_call.1} parent=47 // pred_check
        %p339 = pneg %p150
      $region50: #{tpu_custom_call.1} parent=47 // pred_check_branch
        %341 = sbr.rel (%p339) target = $region52
      $region51: #{tpu_custom_call.1} parent=47 // pred_region
        %p342 = scmp.lt.s32.totalorder %s17, 1
        %s343 = scalar_select %p342, %s17, 1
        %s344 = smul.addr %s343, 16
        %s345 = smul.addr %s344, 8
        %s346 = scalar_lea.vmem %s5, %s345
      $region52: #{tpu_custom_call.1} parent=47 // pred_fallthru
        _
    $region48: #{tpu_custom_call.1} parent=5 // pred_fallthru
      _
  $region6: #{tpu_custom_call.1} parent=0 // loop_footer
    %s15 = sadd.s32 1, %s11
  $region7: #{tpu_custom_call.1} parent=0 // loop_footer_branch
    %10 = sbr.rel target = $region3
  $region8: #{tpu_custom_call.1} parent=0 // loop_exit
    _

</llo_original>
